<compile_context>
chip_gen: v5e
topology: v5e:2x2
jax: 0.10.0
libtpu: 0.0.40
codegen_flags: <defaults>
</compile_context>

<pallas_src>
import functools

import jax
import jax.numpy as jnp
from jax.experimental import pallas as pl
from jax.experimental.pallas import tpu as pltpu


MEAN = 0.0
STD = 1.0

_LANES = 512          # wide lane slab -> unmasked vld/vst, big DMA descriptors
_TILE_ROWS = 1024     # 1024 x 512 x 4B = 2 MiB per buffer (fits v7x VMEM easily)


def _gaussian_noise_kernel(seed_ref, x_ref, o_ref, *, mean, std):
    tile_rows, lanes = x_ref.shape

    # Global flat element index for this tile (counter for the stateless hash).
    row = jax.lax.broadcasted_iota(jnp.int32, (tile_rows, lanes), 0)
    col = jax.lax.broadcasted_iota(jnp.int32, (tile_rows, lanes), 1)
    idx = (pl.program_id(0) * tile_rows + row) * lanes + col

    # Counter-based hash (murmur3 fmix32), keyed by the prefetched seed.
    h = idx.astype(jnp.uint32) ^ (
        seed_ref[0].astype(jnp.uint32) * jnp.uint32(0x9E3779B9)
    )
    h = h ^ (h >> 16)
    h = h * jnp.uint32(0x85EBCA6B)
    h = h ^ (h >> 13)
    h = h * jnp.uint32(0xC2B2AE35)
    h = h ^ (h >> 16)

    # Top 24 bits -> U[0, 1) in f32.
    mant = (h >> 8).astype(jnp.int32)
    u = mant.astype(jnp.float32) * jnp.float32(1.0 / (1 << 24))

    # noise = mean + 2*std*u - std  ==  u * (2*std) + (mean - std)
    noise = u * jnp.float32(2.0 * std) + jnp.float32(mean - std)

    x = x_ref[...].astype(jnp.float32)
    o_ref[...] = jnp.clip(x + noise, 0.0, 1.0).astype(o_ref.dtype)


def gaussian_noise(x: jax.Array, seed: int, mean: float = MEAN, std: float = STD) -> jax.Array:
    """Applies the doctr GaussianNoise transform (float path) via Pallas."""
    # TODO(synk): uint8 branch of the PyTorch forward (x + 255*noise, round,
    # clamp 0..255, cast to uint8) is not implemented (float inputs only).
    assert jnp.issubdtype(x.dtype, jnp.floating)

    orig_shape = x.shape
    n_total = x.size

    lanes = _LANES
    rows = pl.cdiv(n_total, lanes)
    n_padded = rows * lanes

    # Reshape is free; only pad the tail when size is not a multiple of LANES.
    x_flat = x.reshape(-1)
    if n_padded != n_total:
        x_flat = jnp.pad(x_flat, (0, n_padded - n_total))
    x2d = x_flat.reshape(rows, lanes)

    # Tile rows: full array if small, otherwise 2 MiB blocks (multiple of 8/16).
    tile_rows = min(_TILE_ROWS, rows)
    grid = pl.cdiv(rows, tile_rows)

    seed_arr = jnp.asarray([seed], dtype=jnp.int32)
    kernel = functools.partial(_gaussian_noise_kernel, mean=float(mean), std=float(std))

    itemsize = jnp.dtype(x.dtype).itemsize
    cost = pl.CostEstimate(
        flops=12 * n_padded,
        transcendentals=0,
        bytes_accessed=2 * n_padded * itemsize,
    )

    out2d = pl.pallas_call(
        kernel,
        out_shape=jax.ShapeDtypeStruct((rows, lanes), x.dtype),
        grid_spec=pltpu.PrefetchScalarGridSpec(
            num_scalar_prefetch=1,
            grid=(grid,),
            in_specs=[
                pl.BlockSpec((tile_rows, lanes), lambda i, seed_ref: (i, 0)),
            ],
            out_specs=pl.BlockSpec((tile_rows, lanes), lambda i, seed_ref: (i, 0)),
        ),
        compiler_params=pltpu.CompilerParams(
            dimension_semantics=("parallel",),
            vmem_limit_bytes=32 * 1024 * 1024,
        ),
        cost_estimate=cost,
    )(seed_arr, x2d)

    out_flat = out2d.reshape(-1)
    if n_padded != n_total:
        out_flat = out_flat[:n_total]
    return out_flat.reshape(orig_shape)


if __name__ == "__main__":
    key = jax.random.PRNGKey(0)
    # NCHW input, matching the PyTorch module's expected image tensors.
    x = jax.random.uniform(key, (2, 4, 16, 16), dtype=jnp.float32)

    out = gaussian_noise(x, seed=0, mean=0.0, std=1.0)
    out = jax.block_until_ready(out)

    assert out.shape == x.shape
    assert out.dtype == x.dtype
    assert bool(jnp.all(out >= 0.0)) and bool(jnp.all(out <= 1.0))
    # The noise must actually perturb the input.
    assert bool(jnp.any(jnp.abs(out - x) > 1e-6))

    print("KERNEL_OK")
</pallas_src>

<mosaic_0001>
module attributes {stable_mosaic.version = 11 : i64} {
  func.func @_gaussian_noise_kernel(%arg0: i32, %arg1: memref<1xi32, #tpu.memory_space<smem>>, %arg2: memref<4x512xf32, #tpu.memory_space<vmem>>, %arg3: memref<4x512xf32, #tpu.memory_space<vmem>>) attributes {dimension_semantics = [#tpu.dimension_semantics<parallel>], iteration_bounds = array<i64: 1>, scalar_prefetch = 1 : i64, scratch_operands = 0 : i64, tpu.core_type = #tpu.core_type<tc>, window_params = [{transform_indices = @transform_0, window_bounds = array<i64: 4, 512>}, {transform_indices = @transform_1, window_bounds = array<i64: 4, 512>}]} {
    %0 = tpu.iota {dimensions = array<i32: 0>} : vector<4x512xi32>
    %1 = tpu.iota {dimensions = array<i32: 1>} : vector<4x512xi32>
    %c4_i32 = arith.constant 4 : i32
    %2 = arith.muli %arg0, %c4_i32 : i32
    %3 = vector.broadcast %2 : i32 to vector<4x512xi32>
    %4 = arith.addi %3, %0 : vector<4x512xi32>
    %c512_i32 = arith.constant 512 : i32
    %5 = vector.broadcast %c512_i32 : i32 to vector<4x512xi32>
    %6 = arith.muli %4, %5 : vector<4x512xi32>
    %7 = arith.addi %6, %1 : vector<4x512xi32>
    %c0 = arith.constant 0 : index
    %8 = memref.load %arg1[%c0] : memref<1xi32, #tpu.memory_space<smem>>
    %c-1640531527_i32 = arith.constant -1640531527 : i32
    %9 = arith.muli %8, %c-1640531527_i32 : i32
    %10 = vector.broadcast %9 : i32 to vector<4x512xi32>
    %11 = arith.xori %7, %10 : vector<4x512xi32>
    %c16_i32 = arith.constant 16 : i32
    %12 = vector.broadcast %c16_i32 : i32 to vector<4x512xi32>
    %13 = arith.shrui %11, %12 : vector<4x512xi32>
    %14 = arith.xori %11, %13 : vector<4x512xi32>
    %c-2048144789_i32 = arith.constant -2048144789 : i32
    %15 = vector.broadcast %c-2048144789_i32 : i32 to vector<4x512xi32>
    %16 = arith.muli %14, %15 : vector<4x512xi32>
    %c13_i32 = arith.constant 13 : i32
    %17 = vector.broadcast %c13_i32 : i32 to vector<4x512xi32>
    %18 = arith.shrui %16, %17 : vector<4x512xi32>
    %19 = arith.xori %16, %18 : vector<4x512xi32>
    %c-1028477387_i32 = arith.constant -1028477387 : i32
    %20 = vector.broadcast %c-1028477387_i32 : i32 to vector<4x512xi32>
    %21 = arith.muli %19, %20 : vector<4x512xi32>
    %c16_i32_0 = arith.constant 16 : i32
    %22 = vector.broadcast %c16_i32_0 : i32 to vector<4x512xi32>
    %23 = arith.shrui %21, %22 : vector<4x512xi32>
    %24 = arith.xori %21, %23 : vector<4x512xi32>
    %c8_i32 = arith.constant 8 : i32
    %25 = vector.broadcast %c8_i32 : i32 to vector<4x512xi32>
    %26 = arith.shrui %24, %25 : vector<4x512xi32>
    %27 = arith.sitofp %26 : vector<4x512xi32> to vector<4x512xf32>
    %cst = arith.constant 5.96046448E-8 : f32
    %28 = vector.broadcast %cst : f32 to vector<4x512xf32>
    %29 = arith.mulf %27, %28 : vector<4x512xf32>
    %cst_1 = arith.constant 2.000000e+00 : f32
    %30 = vector.broadcast %cst_1 : f32 to vector<4x512xf32>
    %31 = arith.mulf %29, %30 : vector<4x512xf32>
    %cst_2 = arith.constant -1.000000e+00 : f32
    %32 = vector.broadcast %cst_2 : f32 to vector<4x512xf32>
    %33 = arith.addf %31, %32 : vector<4x512xf32>
    %c0_3 = arith.constant 0 : index
    %c0_4 = arith.constant 0 : index
    %34 = vector.load %arg2[%c0_3, %c0_4] : memref<4x512xf32, #tpu.memory_space<vmem>>, vector<4x512xf32>
    %35 = arith.addf %34, %33 : vector<4x512xf32>
    %cst_5 = arith.constant 0.000000e+00 : f32
    %cst_6 = arith.constant 1.000000e+00 : f32
    %36 = vector.broadcast %cst_5 : f32 to vector<4x512xf32>
    %37 = arith.maximumf %36, %35 : vector<4x512xf32>
    %38 = vector.broadcast %cst_6 : f32 to vector<4x512xf32>
    %39 = arith.minimumf %38, %37 : vector<4x512xf32>
    %c0_7 = arith.constant 0 : index
    %c0_8 = arith.constant 0 : index
    %40 = vector.load %arg3[%c0_7, %c0_8] : memref<4x512xf32, #tpu.memory_space<vmem>>, vector<4x512xf32>
    tpu.vector_store %arg3[%c0_7, %c0_8], %39 {strides = array<i32>} : memref<4x512xf32, #tpu.memory_space<vmem>>, vector<4x512xf32>,
    return
  }
  func.func @transform_0(%arg0: i32, %arg1: memref<1xi32, #tpu.memory_space<smem>>) -> (i32, i32) {
    %c0_i32 = arith.constant 0 : i32
    %c0_i32_0 = arith.constant 0 : i32
    return %arg0, %c0_i32 : i32, i32
  }
  func.func @transform_1(%arg0: i32, %arg1: memref<1xi32, #tpu.memory_space<smem>>) -> (i32, i32) {
    %c0_i32 = arith.constant 0 : i32
    %c0_i32_0 = arith.constant 0 : i32
    return %arg0, %c0_i32 : i32, i32
  }
}

</mosaic_0001>

<llo_original>
// kernel: tpu_custom_call.1
$region0: #{tpu_custom_call.1}
  #allocation0 [shape = 'u32[]', space=smem, size = 0x4, offset = 0x4, fixed_abs, tag = 'smem constant byte address 0x4 - core index']
  #allocation1 [shape = 'u32[72,128]{1,0:T(1,128)}', space=vmem, size = 0x9000, scoped, tag = 'internal scratch']
  #allocation2 [shape = 's32[1]{0}', space=sflag, size = 0x4, scoped, tag = 'scoped memory for tpu_custom_call.1']
  #allocation3 [shape = 's32[1]{0:T(128)S(6)}', space=smem, size = 0x200, scoped, tag = 'prefetched SMEM operand 0']
  %s0 = inlined_call_operand.<no memory space> [shape: s32[1], index: 0, kind: input, shape index: {}]
  %s1 = inlined_call_operand.hbm [shape: f32[4,512], index: 1, kind: input, shape index: {}]
  %s2 = inlined_call_operand.hbm [shape: f32[4,512], index: 2, kind: output, shape index: {}]
  %s3 = sld [smem:[#allocation0]]
  $region18: #{tpu_custom_call.1} parent=0
    _
  %s5 = ssub.s32 1, %s3
  %s6 = scalar_select 0, %s5, %s3
  %7 = sst [smem:[#allocation3]] %s0
  $region1: #{tpu_custom_call.1} parent=0
    #allocation4 [shape = 'u8[8192]{0}', space=vmem, size = 0x2000, scoped, tag = 'input window, operand 1, single buffered']
    #allocation5 [shape = 's32[1]{0}', space=sflag, size = 0x4, scoped, tag = 'scoped memory for tpu_custom_call.1']
    #allocation6 [shape = 's32[1]{0}', space=sflag, size = 0x4, scoped, tag = 'scoped memory for tpu_custom_call.1']
    #allocation7 [shape = 'u8[8192]{0}', space=vmem, size = 0x2000, scoped, tag = 'output window, operand 0, single buffered']
    %8 = vsyncpa [#allocation5], 0
    %9 = vsyncpa [#allocation6], 0
    // Predicated region
    $region2: #{tpu_custom_call.1} parent=1 // pred_check
      _
    $region3: #{tpu_custom_call.1} parent=1 // pred_check_branch
      %11 = sbr.rel (0) target = $region5
    $region4: #{tpu_custom_call.1} parent=1 // pred_region
      %13 = vsyncadd [#allocation5], 0
      %s15 = sshll.u32 %s1, 4
      %s16 = int_to_ptr.hbm [resolvable:$true] %s15
      %s17 = sshll.u32 [#allocation4], 4
      %s18 = int_to_ptr.vmem [resolvable:$true] %s17
      %20 = dma.hbm_to_vmem [thread:$0]  %s16, 256, %s18, [#allocation5]
    $region5: #{tpu_custom_call.1} parent=1 // pred_fallthru
      _
    // Predicated region
    $region6: #{tpu_custom_call.1} parent=1 // pred_check
      _
    $region7: #{tpu_custom_call.1} parent=1 // pred_check_branch
      %22 = sbr.rel (0) target = $region9
    $region8: #{tpu_custom_call.1} parent=1 // pred_region
      %24 = dma.done [#allocation5], 256
    $region9: #{tpu_custom_call.1} parent=1 // pred_fallthru
      _
    %v25 = vlaneseq
    %v26 = vshrl.u32 %v25, 7
    %v27 = vlaneseq
    %v28 = vand.u32 %v27, 127
    %v29 = vadd.s32 %v28, 128
    %v30 = vadd.s32 %v28, 256
    %v31 = vadd.s32 %v28, 384
    %s32 = smul.u32 0, 4
    %v33 = vstv %s32
    %v34 = vadd.s32 %v33, %v26
    %v35 = vmul.u32 %v34, 512
    %v36 = vadd.s32 %v35, %v28
    %v37 = vadd.s32 %v35, %v29
    %v38 = vadd.s32 %v35, %v30
    %v39 = vadd.s32 %v35, %v31
    %s40 = sld [smem:[#allocation3]]
    %s41 = smul.u32 %s40, 2654435769
    %v42 = vstv %s41
    %v43 = vxor.u32 %v36, %v42
    %v44 = vxor.u32 %v37, %v42
    %v45 = vxor.u32 %v38, %v42
    %v46 = vxor.u32 %v39, %v42
    %v47 = vshrl.u32 %v43, 16
    %v48 = vshrl.u32 %v44, 16
    %v49 = vshrl.u32 %v45, 16
    %v50 = vshrl.u32 %v46, 16
    %v51 = vxor.u32 %v43, %v47
    %v52 = vxor.u32 %v44, %v48
    %v53 = vxor.u32 %v45, %v49
    %v54 = vxor.u32 %v46, %v50
    %v55 = vmul.u32 %v51, 2246822507
    %v56 = vmul.u32 %v52, 2246822507
    %v57 = vmul.u32 %v53, 2246822507
    %v58 = vmul.u32 %v54, 2246822507
    %v59 = vshrl.u32 %v55, 13
    %v60 = vshrl.u32 %v56, 13
    %v61 = vshrl.u32 %v57, 13
    %v62 = vshrl.u32 %v58, 13
    %v63 = vxor.u32 %v55, %v59
    %v64 = vxor.u32 %v56, %v60
    %v65 = vxor.u32 %v57, %v61
    %v66 = vxor.u32 %v58, %v62
    %v67 = vmul.u32 %v63, 3266489909
    %v68 = vmul.u32 %v64, 3266489909
    %v69 = vmul.u32 %v65, 3266489909
    %v70 = vmul.u32 %v66, 3266489909
    %v71 = vshrl.u32 %v67, 16
    %v72 = vshrl.u32 %v68, 16
    %v73 = vshrl.u32 %v69, 16
    %v74 = vshrl.u32 %v70, 16
    %v75 = vxor.u32 %v67, %v71
    %v76 = vxor.u32 %v68, %v72
    %v77 = vxor.u32 %v69, %v73
    %v78 = vxor.u32 %v70, %v74
    %v79 = vshrl.u32 %v75, 8
    %v80 = vshrl.u32 %v76, 8
    %v81 = vshrl.u32 %v77, 8
    %v82 = vshrl.u32 %v78, 8
    %v83 = vcvt.s32.f32 %v79
    %v84 = vcvt.s32.f32 %v80
    %v85 = vcvt.s32.f32 %v81
    %v86 = vcvt.s32.f32 %v82
    %v87 = vmul.f32 %v83, 5.9604645e-08
    %v88 = vmul.f32 %v84, 5.9604645e-08
    %v89 = vmul.f32 %v85, 5.9604645e-08
    %v90 = vmul.f32 %v86, 5.9604645e-08
    %v91 = vmul.f32 %v87, 2.0
    %v92 = vmul.f32 %v88, 2.0
    %v93 = vmul.f32 %v89, 2.0
    %v94 = vmul.f32 %v90, 2.0
    %v95 = vadd.f32 %v91, -1.0
    %v96 = vadd.f32 %v92, -1.0
    %v97 = vadd.f32 %v93, -1.0
    %v98 = vadd.f32 %v94, -1.0
    %v99 = vld [vmem:[#allocation4] sm:$0xff]
    %v100 = vld [vmem:[#allocation4 + $0x8] sm:$0xff]
    %v105 = vrot.slane %v96, 4
    %v106 = vrot.slane %v98, 4
    %vm107 = vcmask 1043456
    %v108 = vsel %vm107, %v95, %v105
    %v109 = vsel %vm107, %v97, %v106
    %v112 = vadd.f32 %v99, %v108
    %v113 = vadd.f32 %v100, %v109
    %v114 = vmax.f32 %v112, 0.0
    %v115 = vmax.f32 %v113, 0.0
    %v116 = vmin.f32 %v114, 1.0
    %v117 = vmin.f32 %v115, 1.0
    %118 = vst [vmem:[#allocation7] sm:$0xff] %v116
    %119 = vst [vmem:[#allocation7 + $0x8] sm:$0xff] %v117
    // Predicated region
    $region10: #{tpu_custom_call.1} parent=1 // pred_check
      _
    $region11: #{tpu_custom_call.1} parent=1 // pred_check_branch
      %121 = sbr.rel (0) target = $region13
    $region12: #{tpu_custom_call.1} parent=1 // pred_region
      %123 = vsyncadd [#allocation6], 0
      %s125 = sshll.u32 [#allocation7], 4
      %s126 = int_to_ptr.vmem [resolvable:$true] %s125
      %s127 = sshll.u32 %s2, 4
      %s128 = int_to_ptr.hbm [resolvable:$true] %s127
      %130 = dma.vmem_to_hbm [thread:$0]  %s126, 256, %s128, [#allocation6]
    $region13: #{tpu_custom_call.1} parent=1 // pred_fallthru
      _
    // Predicated region
    $region14: #{tpu_custom_call.1} parent=1 // pred_check
      _
    $region15: #{tpu_custom_call.1} parent=1 // pred_check_branch
      %132 = sbr.rel (0) target = $region17
    $region16: #{tpu_custom_call.1} parent=1 // pred_region
      %134 = dma.done [#allocation6], 256
    $region17: #{tpu_custom_call.1} parent=1 // pred_fallthru
      _
    %135 = vsyncpa [#allocation5], 1
    %136 = vsyncpa [#allocation6], 1

</llo_original>
